<compile_context>
chip_gen: v7x
topology: tpu7x:2x2x1
jax: 0.10.0
libtpu: 0.0.40
codegen_flags: <defaults>
</compile_context>

<pallas_src>
import functools
import math

import jax
import jax.numpy as jnp
from jax.experimental import pallas as pl
from jax.experimental.pallas import tpu as pltpu

_EPS = 1e-12  # matches F.normalize-style eps; avoids 0/0 -> NaN


def _margin_head_kernel(label_ref, fea_ref, w_ref, out_ref, *,
                        is_infer, s, cos_m, sin_m, threshold, mm, tile_n,
                        dot_dtype):
    # fea_ref  : [B, E]       pre-L2-normalized features (dot dtype, block resident)
    # w_ref    : [E, tile_n]  RAW weight column tile, streamed dtype (f32 or bf16)
    # label_ref: [B, 1] int32
    # out_ref  : [B, tile_n]  f32 logits tile (lane-dense; ragged tail is masked)
    x = fea_ref[...]
    w = w_ref[...]

    # Per-column inverse L2 norm.  Sum of squares accumulated in f32 (E can be
    # 2048+, bf16 accumulation would lose ~1e-2 relative), rsqrt on the EUP
    # slot instead of sqrt+divide.  Applied AFTER the matmul, so no normalized
    # copy of the (E, tile_n) tile is ever materialized for the MXU.
    w32 = w if w.dtype == jnp.float32 else w.astype(jnp.float32)
    inv_wn = jax.lax.rsqrt(
        jnp.maximum(jnp.sum(w32 * w32, axis=0, keepdims=True), _EPS))

    wd = w if w.dtype == dot_dtype else w.astype(dot_dtype)
    cos = jnp.dot(x, wd, preferred_element_type=jnp.float32) * inv_wn
    cos = jnp.clip(cos, -1.0, 1.0)

    if is_infer:
        # TODO(synk): some variants return raw cos (no *s) at inference.
        out_ref[...] = cos * s
    else:
        sin = jnp.sqrt(jnp.maximum(1.0 - cos * cos, 0.0))
        cos_theta_m = cos * cos_m - sin * sin_m
        # fall back to (cos - sin(m)*m) when theta + m would exceed pi
        cos_theta_m = jnp.where(cos - threshold <= 0.0, cos - mm, cos_theta_m)

        j = pl.program_id(0)
        # True global column ids: labels are < C, so the masked ragged-tail
        # columns (ids >= C) can never be selected.
        col_ids = jax.lax.broadcasted_iota(jnp.int32, cos.shape, 1) + j * tile_n
        onehot = label_ref[...] == col_ids          # [B,1] broadcast vs [B,tile_n]
        out_ref[...] = jnp.where(onehot, cos_theta_m, cos) * s


def _choose_class_tile(C, E, B, w_itemsize, max_tile_n, vmem_budget_bytes):
    """Pick the widest lane-dense (multiple-of-128) class tile that fits the
    VMEM budget; force >= 2 tiles for C > 256 so both v7x TensorCores get work.
    Returns (tile_n, n_tiles); the grid may be ragged (last tile partial)."""
    if C < 128:
        return C, 1  # single block, last dim == full array dim (allowed)

    B8 = ((B + 7) // 8) * 8  # sublane-padded rows as stored in VMEM

    # Per-tile-width footprint (bytes):
    #   2 x (E, t) weight buffers (double-buffered input)
    #   2 x (B, t) f32 output buffers (double-buffered output)
    #   ~3 x (B, t) f32 epilogue temporaries (sin / cos_theta_m / select)
    # Constant part: 2 x (B, E) fea block + 2 x (B, 1->128) label block.
    const = 2 * (B8 * E * 4) + 2 * (B8 * 128 * 4)
    per_t = 2 * E * w_itemsize + 5 * B8 * 4
    avail = max(vmem_budget_bytes - const, 0)
    t_fit = (avail // per_t) // 128 * 128  # largest fitting multiple of 128

    t_cap = min(max_tile_n, (C // 128) * 128)
    # TODO(synk): if even a 128-wide tile overflows the budget (huge B*E) the
    #             batch dimension would need tiling too; not needed for this head.
    tile_n = max(128, min(t_fit, t_cap))
    n_tiles = -(-C // tile_n)

    # v7x has 2 TensorCores: make sure the "parallel" grid axis has >= 2 steps
    # for mid/large class counts (negligible cost on single-TC v5e/v6e).
    if n_tiles < 2 and C > 256:
        tile_n = max(128, ((C + 1) // 2 + 127) // 128 * 128)
        n_tiles = -(-C // tile_n)
    return tile_n, n_tiles


def margin_head(fea, weight, label, *, is_infer=False, s=64.0, m=0.5,
                dot_dtype=None, max_tile_n=4096):
    """fea: [B, E], weight: [E, C], label: [B] int32 -> logits [B, C] f32.

    The weight is streamed in whatever dtype it is stored in (no per-call
    astype: store W in bf16 to halve HBM traffic).  `dot_dtype` overrides the
    MXU input dtype (default: bf16 if W is bf16, else exact f32); the column
    norm and matmul accumulation always stay f32.
    """
    B, E = fea.shape
    E2, C = weight.shape
    assert E == E2

    # Hoisted per-row feature L2 norm: computed once in f32 (rsqrt * mul),
    # not once per class tile.
    fea32 = fea.astype(jnp.float32)
    fea_n = fea32 * jax.lax.rsqrt(
        jnp.maximum(jnp.sum(fea32 * fea32, axis=1, keepdims=True), _EPS))

    if dot_dtype is None:
        dot_dtype = jnp.bfloat16 if weight.dtype == jnp.bfloat16 else jnp.float32
    dot_dtype = jnp.dtype(dot_dtype)
    fea_n = fea_n.astype(dot_dtype)  # one tiny B x E cast, wrapper-side

    # Generation-aware VMEM: scoped limit = half the physical VMEM
    # (64 MiB on v5e/v6e's 128 MiB, 32 MiB on v7x's 64 MiB); tile search uses
    # 3/4 of the limit as budget to leave headroom for internal scratch.
    try:
        vmem_cap = int(pltpu.get_tpu_info().vmem_capacity_bytes)
    except Exception:
        vmem_cap = 64 * 1024 * 1024  # conservative (v7x-sized) fallback
    vmem_limit = min(vmem_cap // 2, 64 * 1024 * 1024)
    vmem_budget = (vmem_limit * 3) // 4

    w_itemsize = jnp.dtype(weight.dtype).itemsize
    tile_n, n_tiles = _choose_class_tile(C, E, B, w_itemsize, max_tile_n,
                                         vmem_budget)

    kernel = functools.partial(
        _margin_head_kernel,
        is_infer=is_infer,
        s=float(s),
        cos_m=math.cos(m),
        sin_m=math.sin(m),
        threshold=math.cos(math.pi - m),
        mm=math.sin(m) * m,
        tile_n=tile_n,
        dot_dtype=dot_dtype,
    )

    label2d = label.astype(jnp.int32).reshape(B, 1)

    # Output is written at its true (B, C) shape: the ragged last class tile
    # (if any) has its out-of-range writes masked by Pallas; out-of-range
    # weight-column reads only produce garbage in columns that are never
    # written back.
    out = pl.pallas_call(
        kernel,
        out_shape=jax.ShapeDtypeStruct((B, C), jnp.float32),
        grid_spec=pltpu.PrefetchScalarGridSpec(
            num_scalar_prefetch=0,
            grid=(n_tiles,),
            in_specs=[
                pl.BlockSpec((B, 1), lambda j: (0, 0)),        # label (constant block)
                pl.BlockSpec((B, E), lambda j: (0, 0)),        # fea_n (constant block)
                pl.BlockSpec((E, tile_n), lambda j: (0, j)),   # weight column tile
            ],
            out_specs=pl.BlockSpec((B, tile_n), lambda j: (0, j)),
        ),
        compiler_params=pltpu.CompilerParams(
            # "parallel" lets v7x shard column tiles across its 2 TensorCores;
            # no-op on single-TC v5e/v6e.
            dimension_semantics=("parallel",),
            vmem_limit_bytes=int(vmem_limit),
        ),
    )(label2d, fea_n, weight)

    return out


def margin_head_ref(fea, weight, label, *, is_infer=False, s=64.0, m=0.5):
    """Pure-JAX reference for correctness checking."""
    fea = fea.astype(jnp.float32)
    weight = weight.astype(jnp.float32)
    x = fea * jax.lax.rsqrt(
        jnp.maximum(jnp.sum(fea * fea, axis=1, keepdims=True), _EPS))
    w = weight * jax.lax.rsqrt(
        jnp.maximum(jnp.sum(weight * weight, axis=0, keepdims=True), _EPS))
    cos = jnp.clip(x @ w, -1.0, 1.0)
    if is_infer:
        return cos * s
    sin = jnp.sqrt(jnp.maximum(1.0 - cos * cos, 0.0))
    cos_theta_m = cos * math.cos(m) - sin * math.sin(m)
    cos_theta_m = jnp.where(cos - math.cos(math.pi - m) <= 0.0,
                            cos - math.sin(m) * m, cos_theta_m)
    onehot = jax.nn.one_hot(label, cos.shape[1], dtype=jnp.bool_)
    return jnp.where(onehot, cos_theta_m, cos) * s


if __name__ == "__main__":
    # Small shapes consistent with the module: batch=8, emb_size=32, num_class=256.
    B, E, C = 8, 32, 256
    key = jax.random.PRNGKey(0)
    k_fea, k_w, k_lbl, k_w3, k_lbl3 = jax.random.split(key, 5)

    fea = jax.random.normal(k_fea, (B, E), dtype=jnp.float32)
    weight = jax.random.uniform(k_w, (E, C), dtype=jnp.float32,
                                minval=-1.0, maxval=1.0)
    label = jax.random.randint(k_lbl, (B,), 0, C, dtype=jnp.int32)

    # f32 weight path (exact f32 dot)
    logit_train = jax.block_until_ready(margin_head(fea, weight, label, is_infer=False))
    logit_infer = jax.block_until_ready(margin_head(fea, weight, label, is_infer=True))
    ref_train = margin_head_ref(fea, weight, label, is_infer=False)
    ref_infer = margin_head_ref(fea, weight, label, is_infer=True)
    assert logit_train.shape == (B, C) and logit_infer.shape == (B, C)
    assert jnp.allclose(logit_train, ref_train, atol=1e-4, rtol=1e-4)
    assert jnp.allclose(logit_infer, ref_infer, atol=1e-4, rtol=1e-4)

    # Ragged class count (C not a multiple of 128) -> 2-step grid, masked tail.
    C2 = 200
    weight2 = weight[:, :C2]
    label2 = jnp.minimum(label, C2 - 1)
    logit2 = jax.block_until_ready(margin_head(fea, weight2, label2, is_infer=False))
    ref2 = margin_head_ref(fea, weight2, label2, is_infer=False)
    assert logit2.shape == (B, C2)
    assert jnp.allclose(logit2, ref2, atol=1e-4, rtol=1e-4)

    # Forced >=2-tile split for C > 256 (v7x TC parallelism path).
    C3 = 512
    weight3 = jax.random.uniform(k_w3, (E, C3), dtype=jnp.float32,
                                 minval=-1.0, maxval=1.0)
    label3 = jax.random.randint(k_lbl3, (B,), 0, C3, dtype=jnp.int32)
    logit3 = jax.block_until_ready(margin_head(fea, weight3, label3, is_infer=False))
    ref3 = margin_head_ref(fea, weight3, label3, is_infer=False)
    assert logit3.shape == (B, C3)
    assert jnp.allclose(logit3, ref3, atol=1e-4, rtol=1e-4)

    # Natively-bf16-stored weight: streamed as-is (no wrapper astype), bf16 MXU
    # dot with f32 accumulation.  Inference path (branch-free) for a robust
    # tolerance against the f32 reference using the same bf16-rounded weight.
    weight_bf16 = weight.astype(jnp.bfloat16)
    logit_bf16 = jax.block_until_ready(
        margin_head(fea, weight_bf16, label, is_infer=True))
    ref_bf16 = margin_head_ref(fea, weight_bf16.astype(jnp.float32), label,
                               is_infer=True)
    assert jnp.allclose(logit_bf16, ref_bf16, atol=0.2, rtol=1e-2)

    print("KERNEL_OK")
</pallas_src>

<mosaic_0001>
module attributes {stable_mosaic.version = 11 : i64} {
  func.func @_margin_head_kernel(%arg0: i32, %arg1: memref<8x1xi32, #tpu.memory_space<vmem>>, %arg2: memref<8x32xf32, #tpu.memory_space<vmem>>, %arg3: memref<32x256xf32, #tpu.memory_space<vmem>>, %arg4: memref<8x256xf32, #tpu.memory_space<vmem>>) attributes {dimension_semantics = [#tpu.dimension_semantics<parallel>], iteration_bounds = array<i64: 1>, scalar_prefetch = 0 : i64, scratch_operands = 0 : i64, tpu.core_type = #tpu.core_type<tc>, window_params = [{pipeline_mode = #tpu.pipeline_mode<synchronous>, transform_indices = @transform_0, window_bounds = array<i64: 8, 1>}, {pipeline_mode = #tpu.pipeline_mode<synchronous>, transform_indices = @transform_1, window_bounds = array<i64: 8, 32>}, {transform_indices = @transform_2, window_bounds = array<i64: 32, 256>}, {transform_indices = @transform_3, window_bounds = array<i64: 8, 256>}]} {
    %c0 = arith.constant 0 : index
    %c0_0 = arith.constant 0 : index
    %0 = vector.load %arg2[%c0, %c0_0] : memref<8x32xf32, #tpu.memory_space<vmem>>, vector<8x32xf32>
    %c0_1 = arith.constant 0 : index
    %c0_2 = arith.constant 0 : index
    %1 = vector.load %arg3[%c0_1, %c0_2] : memref<32x256xf32, #tpu.memory_space<vmem>>, vector<32x256xf32>
    %2 = arith.mulf %1, %1 : vector<32x256xf32>
    %cst = arith.constant dense<0.000000e+00> : vector<256xf32>
    %3 = vector.multi_reduction <add>, %2, %cst [0] : vector<32x256xf32> to vector<256xf32>
    %4 = vector.shape_cast %3 : vector<256xf32> to vector<1x256xf32>
    %cst_3 = arith.constant 9.99999996E-13 : f32
    %5 = vector.broadcast %cst_3 : f32 to vector<1x256xf32>
    %6 = arith.maximumf %4, %5 : vector<1x256xf32>
    %7 = math.rsqrt %6 : vector<1x256xf32>
    %cst_4 = arith.constant dense<0.000000e+00> : vector<8x256xf32>
    %8 = tpu.matmul %0, %1, %cst_4 {dimension_numbers = #tpu.dot_dimension_numbers<[1], [0], [0], [1], [0, 0, 1, 1], [], []>} : vector<8x32xf32>, vector<32x256xf32>, vector<8x256xf32> -> vector<8x256xf32>
    %9 = vector.broadcast %7 : vector<1x256xf32> to vector<8x256xf32>
    %10 = arith.mulf %8, %9 : vector<8x256xf32>
    %cst_5 = arith.constant -1.000000e+00 : f32
    %cst_6 = arith.constant 1.000000e+00 : f32
    %11 = vector.broadcast %cst_5 : f32 to vector<8x256xf32>
    %12 = arith.maximumf %11, %10 : vector<8x256xf32>
    %13 = vector.broadcast %cst_6 : f32 to vector<8x256xf32>
    %14 = arith.minimumf %13, %12 : vector<8x256xf32>
    %15 = arith.mulf %14, %14 : vector<8x256xf32>
    %cst_7 = arith.constant 1.000000e+00 : f32
    %16 = vector.broadcast %cst_7 : f32 to vector<8x256xf32>
    %17 = arith.subf %16, %15 : vector<8x256xf32>
    %cst_8 = arith.constant 0.000000e+00 : f32
    %18 = vector.broadcast %cst_8 : f32 to vector<8x256xf32>
    %19 = arith.maximumf %17, %18 : vector<8x256xf32>
    %20 = math.sqrt %19 : vector<8x256xf32>
    %cst_9 = arith.constant 0.87758255 : f32
    %21 = vector.broadcast %cst_9 : f32 to vector<8x256xf32>
    %22 = arith.mulf %14, %21 : vector<8x256xf32>
    %cst_10 = arith.constant 0.47942555 : f32
    %23 = vector.broadcast %cst_10 : f32 to vector<8x256xf32>
    %24 = arith.mulf %20, %23 : vector<8x256xf32>
    %25 = arith.subf %22, %24 : vector<8x256xf32>
    %cst_11 = arith.constant -0.87758255 : f32
    %26 = vector.broadcast %cst_11 : f32 to vector<8x256xf32>
    %27 = arith.subf %14, %26 : vector<8x256xf32>
    %cst_12 = arith.constant 0.000000e+00 : f32
    %28 = vector.broadcast %cst_12 : f32 to vector<8x256xf32>
    %29 = arith.cmpf ole, %27, %28 : vector<8x256xf32>
    %cst_13 = arith.constant 0.239712775 : f32
    %30 = vector.broadcast %cst_13 : f32 to vector<8x256xf32>
    %31 = arith.subf %14, %30 : vector<8x256xf32>
    %32 = arith.select %29, %31, %25 : vector<8x256xi1>, vector<8x256xf32>
    %33 = tpu.iota {dimensions = array<i32: 1>} : vector<8x256xi32>
    %c256_i32 = arith.constant 256 : i32
    %34 = arith.muli %arg0, %c256_i32 : i32
    %35 = vector.broadcast %34 : i32 to vector<8x256xi32>
    %36 = arith.addi %33, %35 : vector<8x256xi32>
    %c0_14 = arith.constant 0 : index
    %c0_15 = arith.constant 0 : index
    %37 = vector.load %arg1[%c0_14, %c0_15] : memref<8x1xi32, #tpu.memory_space<vmem>>, vector<8x1xi32>
    %38 = vector.broadcast %37 : vector<8x1xi32> to vector<8x256xi32>
    %39 = arith.cmpi eq, %38, %36 : vector<8x256xi32>
    %40 = arith.select %39, %32, %14 : vector<8x256xi1>, vector<8x256xf32>
    %cst_16 = arith.constant 6.400000e+01 : f32
    %41 = vector.broadcast %cst_16 : f32 to vector<8x256xf32>
    %42 = arith.mulf %40, %41 : vector<8x256xf32>
    %c0_17 = arith.constant 0 : index
    %c0_18 = arith.constant 0 : index
    %43 = vector.load %arg4[%c0_17, %c0_18] : memref<8x256xf32, #tpu.memory_space<vmem>>, vector<8x256xf32>
    tpu.vector_store %arg4[%c0_17, %c0_18], %42 {strides = array<i32>} : memref<8x256xf32, #tpu.memory_space<vmem>>, vector<8x256xf32>,
    return
  }
  func.func @transform_0(%arg0: i32) -> (i32, i32) {
    %c0_i32 = arith.constant 0 : i32
    %c0_i32_0 = arith.constant 0 : i32
    %c0_i32_1 = arith.constant 0 : i32
    return %c0_i32, %c0_i32_0 : i32, i32
  }
  func.func @transform_1(%arg0: i32) -> (i32, i32) {
    %c0_i32 = arith.constant 0 : i32
    %c0_i32_0 = arith.constant 0 : i32
    %c0_i32_1 = arith.constant 0 : i32
    return %c0_i32, %c0_i32_0 : i32, i32
  }
  func.func @transform_2(%arg0: i32) -> (i32, i32) {
    %c0_i32 = arith.constant 0 : i32
    %c0_i32_0 = arith.constant 0 : i32
    return %c0_i32, %arg0 : i32, i32
  }
  func.func @transform_3(%arg0: i32) -> (i32, i32) {
    %c0_i32 = arith.constant 0 : i32
    %c0_i32_0 = arith.constant 0 : i32
    return %c0_i32, %arg0 : i32, i32
  }
}

</mosaic_0001>

<llo_original>
// kernel: tpu_custom_call.1
$region0: #{tpu_custom_call.1}
  #allocation0 [shape = 'u32[]', space=smem, size = 0x4, offset = 0x4, fixed_abs, tag = 'smem constant byte address 0x4 - core index']
  #allocation1 [shape = 'u32[144,128]{1,0:T(1,128)}', space=vmem, size = 0x12000, scoped, tag = 'internal scratch']
  %s0 = inlined_call_operand.vmem [shape: s32[8,1], index: 0, kind: input, shape index: {}]
  %s1 = inlined_call_operand.vmem [shape: f32[8,32], index: 1, kind: input, shape index: {}]
  %s2 = inlined_call_operand.hbm [shape: f32[32,256], index: 2, kind: input, shape index: {}]
  %s3 = inlined_call_operand.hbm [shape: f32[8,256], index: 3, kind: output, shape index: {}]
  %s4 = sld [smem:[#allocation0]]
  $region26: #{tpu_custom_call.1} parent=0
    _
  %s6 = ssub.s32 1, %s4
  %s7 = scalar_select 0, %s6, %s4
  $region1: #{tpu_custom_call.1} parent=0
    #allocation2 [shape = 'u8[32768]{0}', space=vmem, size = 0x8000, scoped, tag = 'input window, operand 2, single buffered']
    #allocation3 [shape = 's32[1]{0}', space=sflag, size = 0x4, scoped, tag = 'scoped memory for tpu_custom_call.1']
    #allocation4 [shape = 's32[1]{0}', space=sflag, size = 0x4, scoped, tag = 'scoped memory for tpu_custom_call.1']
    #allocation5 [shape = 'u8[8192]{0}', space=vmem, size = 0x2000, scoped, tag = 'output window, operand 0, single buffered']
    %8 = vsyncpa [#allocation3], 0
    %9 = vsyncpa [#allocation4], 0
    // Predicated region
    $region2: #{tpu_custom_call.1} parent=1 // pred_check
      _
    $region3: #{tpu_custom_call.1} parent=1 // pred_check_branch
      %11 = sbr.rel (0) target = $region5
    $region4: #{tpu_custom_call.1} parent=1 // pred_region
      _
    $region5: #{tpu_custom_call.1} parent=1 // pred_fallthru
      _
    // Predicated region
    $region6: #{tpu_custom_call.1} parent=1 // pred_check
      _
    $region7: #{tpu_custom_call.1} parent=1 // pred_check_branch
      %13 = sbr.rel (0) target = $region9
    $region8: #{tpu_custom_call.1} parent=1 // pred_region
      _
    $region9: #{tpu_custom_call.1} parent=1 // pred_fallthru
      _
    // Predicated region
    $region10: #{tpu_custom_call.1} parent=1 // pred_check
      _
    $region11: #{tpu_custom_call.1} parent=1 // pred_check_branch
      %15 = sbr.rel (0) target = $region13
    $region12: #{tpu_custom_call.1} parent=1 // pred_region
      %s17 = ssub.s32 1024, 1024
      %18 = vsyncadd [#allocation3], %s17
      %s19 = sshll.u32 [#allocation2], 4
      %s20 = int_to_ptr.vmem [resolvable:$true] %s19
      %25 = dma.hbm_to_vmem [thread:$0]  %s2, 1024, %s20, [#allocation3], 256, 256, 16
    $region13: #{tpu_custom_call.1} parent=1 // pred_fallthru
      _
    // Predicated region
    $region14: #{tpu_custom_call.1} parent=1 // pred_check
      _
    $region15: #{tpu_custom_call.1} parent=1 // pred_check_branch
      %27 = sbr.rel (0) target = $region17
    $region16: #{tpu_custom_call.1} parent=1 // pred_region
      %28 = dma.done [#allocation3], 1024
    $region17: #{tpu_custom_call.1} parent=1 // pred_fallthru
      _
    %v29 = vld [vmem:[%s1] sm:$0xff]
    %v30 = vld [vmem:[#allocation2] sm:$0xff]
    %v31 = vld [vmem:[#allocation2 + $0x8] sm:$0xff]
    %v32 = vld [vmem:[#allocation2 + $0x10] sm:$0xff]
    %v33 = vld [vmem:[#allocation2 + $0x18] sm:$0xff]
    %v34 = vld [vmem:[#allocation2 + $0x20] sm:$0xff]
    %v35 = vld [vmem:[#allocation2 + $0x28] sm:$0xff]
    %v36 = vld [vmem:[#allocation2 + $0x30] sm:$0xff]
    %v37 = vld [vmem:[#allocation2 + $0x38] sm:$0xff]
    %v38 = vmul.f32 %v30, %v30
    %v39 = vmul.f32 %v31, %v31
    %v40 = vmul.f32 %v32, %v32
    %v41 = vmul.f32 %v33, %v33
    %v42 = vmul.f32 %v34, %v34
    %v43 = vmul.f32 %v35, %v35
    %v44 = vmul.f32 %v36, %v36
    %v45 = vmul.f32 %v37, %v37
    %v46 = vadd.f32 %v38, %v40
    %v47 = vadd.f32 %v46, %v42
    %v48 = vadd.f32 %v47, %v44
    %v49 = vrot.slane %v48, 4
    %v50 = vadd.f32 %v48, %v49
    %v51 = vrot.slane %v50, 2
    %v52 = vadd.f32 %v50, %v51
    %v53 = vrot.slane %v52, 1
    %v54 = vadd.f32 %v52, %v53
    %v55 = vadd.f32 %v39, %v41
    %v56 = vadd.f32 %v55, %v43
    %v57 = vadd.f32 %v56, %v45
    %v58 = vrot.slane %v57, 4
    %v59 = vadd.f32 %v57, %v58
    %v60 = vrot.slane %v59, 2
    %v61 = vadd.f32 %v59, %v60
    %v62 = vrot.slane %v61, 1
    %v63 = vadd.f32 %v61, %v62
    %v64 = vmax.f32 %v54, 1e-12
    %v65 = vmax.f32 %v63, 1e-12
    %v66 = vrsqrt.pop %v64
    %v67 = vrsqrt.pop %v65
    %vm68 = vcmask 261120
    %v70 = vsel %vm68, %v29, 0
    %72 = vmatprep.subr.mxu0 %v31
    %73 = vmatpush1.msra.mxu0 %v30
    %74 = vmatprep.subr.mxu0 %v33
    %75 = vmatpush1.msra.mxu0 %v32
    %76 = vmatprep.subr.mxu0 %v35
    %77 = vmatpush1.msra.mxu0 %v34
    %78 = vmatprep.subr.mxu0 %v37
    %79 = vmatpush1.msra.mxu0 %v36
    %80 = vmatprep.subr.mxu0 0.0
    %81 = vmatpush1.msra.mxu0 0.0
    %82 = vmatprep.subr.mxu0 0.0
    %83 = vmatpush1.msra.mxu0 0.0
    %84 = vmatprep.subr.mxu0 0.0
    %85 = vmatpush1.msra.mxu0 0.0
    %86 = vmatprep.subr.mxu0 0.0
    %87 = vmatpush1.msra.mxu0 0.0
    %88 = vmatprep.subr.mxu0 0.0
    %89 = vmatpush1.msra.mxu0 0.0
    %90 = vmatprep.subr.mxu0 0.0
    %91 = vmatpush1.msra.mxu0 0.0
    %92 = vmatprep.subr.mxu0 0.0
    %93 = vmatpush1.msra.mxu0 0.0
    %94 = vmatprep.subr.mxu0 0.0
    %95 = vmatpush1.msra.mxu0 0.0
    %96 = vmatprep.subr.mxu0 0.0
    %97 = vmatpush1.msra.mxu0 0.0
    %98 = vmatprep.subr.mxu0 0.0
    %99 = vmatpush1.msra.mxu0 0.0
    %100 = vmatprep.subr.mxu0 0.0
    %101 = vmatpush1.msra.mxu0 0.0
    %102 = vmatprep.subr.mxu0 0.0
    %103 = vmatpush1.msra.mxu0 0.0
    %104 = vmatprep.subr.mxu0 0.0
    %105 = vmatpush1.msra.mxu0 0.0
    %106 = vmatprep.subr.mxu0 0.0
    %107 = vmatpush1.msra.mxu0 0.0
    %108 = vmatprep.subr.mxu0 0.0
    %109 = vmatpush1.msra.mxu0 0.0
    %110 = vmatprep.subr.mxu0 0.0
    %111 = vmatpush1.msra.mxu0 0.0
    %112 = vmatprep.subr.mxu0 0.0
    %113 = vmatpush1.msra.mxu0 0.0
    %114 = vmatprep.subr.mxu0 0.0
    %115 = vmatpush1.msra.mxu0 0.0
    %116 = vmatprep.subr.mxu0 0.0
    %117 = vmatpush1.msra.mxu0 0.0
    %118 = vmatprep.subr.mxu0 0.0
    %119 = vmatpush1.msra.mxu0 0.0
    %120 = vmatprep.subr.mxu0 0.0
    %121 = vmatpush1.msra.mxu0 0.0
    %122 = vmatprep.subr.mxu0 0.0
    %123 = vmatpush1.msra.mxu0 0.0
    %124 = vmatprep.subr.mxu0 0.0
    %125 = vmatpush1.msra.mxu0 0.0
    %126 = vmatprep.subr.mxu0 0.0
    %127 = vmatpush1.msra.mxu0 0.0
    %128 = vmatprep.subr.mxu0 0.0
    %129 = vmatpush1.msra.mxu0 0.0
    %130 = vmatprep.subr.mxu0 0.0
    %131 = vmatpush1.msra.mxu0 0.0
    %132 = vmatprep.subr.mxu0 0.0
    %133 = vmatpush1.msra.mxu0 0.0
    %134 = vmatprep.subr.mxu0 0.0
    %135 = vmatpush1.msra.mxu0 0.0
    %136 = vmatprep.mubr.f32.mxu0 0.0
    %137 = vmatmul.mubr.f32.gmra.mrb[0].mxu0 %v70
    %v138 = vpop.f32.mrb[0].mxu0
    %v139 = vadd.f32 0.0, %v138
    %v140 = vpop.f32.mrb[0].mxu0
    %v141 = vadd.f32 0.0, %v140
    %142 = vdwg.mxu0
    %v143 = vmul.f32 %v139, %v66
    %v144 = vmul.f32 %v141, %v67
    %v145 = vmax.f32 %v143, -1.0
    %v146 = vmax.f32 %v144, -1.0
    %v147 = vmin.f32 %v145, 1.0
    %v148 = vmin.f32 %v146, 1.0
    %v149 = vmul.f32 %v147, %v147
    %v150 = vmul.f32 %v148, %v148
    %v151 = vsub.f32 1.0, %v149
    %v152 = vsub.f32 1.0, %v150
    %v153 = vmax.f32 %v151, 0.0
    %v154 = vmax.f32 %v152, 0.0
    %v155 = vrsqrt.pop %v153
    %v156 = vmul.f32 %v153, %v155
    %vm157 = vcmp.eq.f32.partialorder %v153, inf
    %v158 = vsel %vm157, %v153, %v156
    %vm159 = vcmp.eq.f32.partialorder %v153, 0.0
    %v160 = vand.u32 %v153, 2147483648
    %v161 = vsel %vm159, %v160, %v158
    %v162 = vrsqrt.pop %v154
    %v163 = vmul.f32 %v154, %v162
    %vm164 = vcmp.eq.f32.partialorder %v154, inf
    %v165 = vsel %vm164, %v154, %v163
    %vm166 = vcmp.eq.f32.partialorder %v154, 0.0
    %v167 = vand.u32 %v154, 2147483648
    %v168 = vsel %vm166, %v167, %v165
    %v169 = vmul.f32 %v147, 0.87758255
    %v170 = vmul.f32 %v148, 0.87758255
    %v171 = vmul.f32 %v161, 0.47942555
    %v172 = vmul.f32 %v168, 0.47942555
    %v173 = vsub.f32 %v169, %v171
    %v174 = vsub.f32 %v170, %v172
    %v175 = vsub.f32 %v147, -0.87758255
    %v176 = vsub.f32 %v148, -0.87758255
    %vm177 = vcmp.le.f32.partialorder %v175, 0.0
    %vm178 = vcmp.le.f32.partialorder %v176, 0.0
    %v179 = vsub.f32 %v147, 0.23971277
    %v180 = vsub.f32 %v148, 0.23971277
    %v181 = vsel %vm177, %v179, %v173
    %v182 = vsel %vm178, %v180, %v174
    %v183 = vlaneseq
    %v184 = vand.u32 %v183, 127
    %v185 = vadd.s32 %v184, 128
    %s186 = smul.u32 0, 256
    %v187 = vstv %s186
    %v188 = vadd.s32 %v184, %v187
    %v189 = vadd.s32 %v185, %v187
    %v190 = vld [vmem:[%s0] sm:$0xff]
    %191 = vset.pattern.permute.xlu0 0
    %192 = vperm.xlu0 %191, %v190
    %v193 = vpop.permute.xlu0 %192
    %vm194 = vcmp.eq.s32.totalorder %v193, %v188
    %vm195 = vcmp.eq.s32.totalorder %v193, %v189
    %v196 = vsel %vm194, %v181, %v147
    %v197 = vsel %vm195, %v182, %v148
    %v198 = vmul.f32 %v196, 64.0
    %v199 = vmul.f32 %v197, 64.0
    %200 = vst [vmem:[#allocation5] sm:$0xff] %v198
    %201 = vst [vmem:[#allocation5 + $0x8] sm:$0xff] %v199
    // Predicated region
    $region18: #{tpu_custom_call.1} parent=1 // pred_check
      _
    $region19: #{tpu_custom_call.1} parent=1 // pred_check_branch
      %203 = sbr.rel (0) target = $region21
    $region20: #{tpu_custom_call.1} parent=1 // pred_region
      %s205 = ssub.s32 256, 256
      %206 = vsyncadd [#allocation4], %s205
      %s208 = sshll.u32 [#allocation5], 4
      %s209 = int_to_ptr.vmem [resolvable:$true] %s208
      %211 = dma.vmem_to_hbm [thread:$0]  %s209, 256, %s3, [#allocation4]
    $region21: #{tpu_custom_call.1} parent=1 // pred_fallthru
      _
    // Predicated region
    $region22: #{tpu_custom_call.1} parent=1 // pred_check
      _
    $region23: #{tpu_custom_call.1} parent=1 // pred_check_branch
      %213 = sbr.rel (0) target = $region25
    $region24: #{tpu_custom_call.1} parent=1 // pred_region
      %214 = dma.done [#allocation4], 256
    $region25: #{tpu_custom_call.1} parent=1 // pred_fallthru
      _
    %215 = vsyncpa [#allocation3], 1
    %216 = vsyncpa [#allocation4], 1

</llo_original>
